<compile_context>
chip_gen: v7x
topology: tpu7x:2x2x1
jax: 0.10.0
libtpu: 0.0.40
codegen_flags: <defaults>
</compile_context>

<pallas_src>
import jax
import jax.numpy as jnp
from jax.experimental import pallas as pl
from jax.experimental.pallas import tpu as pltpu

ATT_DIM = 128      # attention hidden dim (hard-coded 128 in the module)
CONV_CH = 32       # AttentionConv output channels
CONV_K = 31        # conv_kernel_size default
CONV_PAD = 15      # Conv1d padding


# ----------------------------------------------------------------------------- parameters
def init_params(key, *, d_model, d_model_e, vocab_size, reduction_rate):
    """Module-like parameters. Linear weights stored pre-transposed as (in, out)."""
    d2 = 2 * d_model
    d4 = 4 * d_model
    keys = jax.random.split(key, 24)

    def w(k, shape, scale=0.05):
        return (scale * jax.random.normal(k, shape)).astype(jnp.float32)

    p = {}
    p["wc"] = w(keys[0], (CONV_CH, CONV_K))                 # AttentionConv (out_ch, k), no bias
    p["wcp"] = w(keys[1], (CONV_CH, ATT_DIM))               # AttentionConvProj, no bias
    p["we"] = w(keys[2], (d_model_e, ATT_DIM))              # AttentionEncoderProj
    p["be"] = w(keys[3], (1, ATT_DIM))
    p["wd"] = w(keys[4], (d4, ATT_DIM))                     # AttentionDecoderProj, no bias
    p["wself"] = w(keys[5], (1, ATT_DIM))                   # AttentionSelfProj (128 -> 1), no bias
    p["wp1"] = w(keys[6], (vocab_size, d_model))            # Prenet1
    p["bp1"] = w(keys[7], (1, d_model))
    p["wp2"] = w(keys[8], (d_model, d_model))               # Prenet2
    p["bp2"] = w(keys[9], (1, d_model))
    p["wys"] = w(keys[10], (d_model, 4 * d4))               # L_l1_ys, no bias
    p["wss1"] = w(keys[11], (d4, 4 * d4))                   # L_l1_ss, no bias
    p["wgs"] = w(keys[12], (d2, 4 * d4))                    # L_l1_gs
    p["bgs"] = w(keys[13], (1, 4 * d4))
    p["wis"] = w(keys[14], (d4, 4 * d4))                    # L_l2_is, no bias
    p["wss2"] = w(keys[15], (d4, 4 * d4))                   # L_l2_ss
    p["bss2"] = w(keys[16], (1, 4 * d4))
    p["wf"] = w(keys[17], (d4 + d2, vocab_size * reduction_rate))   # FrameProj
    p["bf"] = w(keys[18], (1, vocab_size * reduction_rate))
    p["wt"] = w(keys[19], (d4 + d2, reduction_rate))        # TokenProj
    p["bt"] = w(keys[20], (1, reduction_rate))
    return p


def pack_params(p, *, d_model, L, B, compute_dtype):
    """Host-side weight fusion / pre-processing for the step kernel."""
    A = ATT_DIM
    K = CONV_K
    PAD = CONV_PAD
    d4 = 4 * d_model
    f32 = jnp.float32
    cdt = compute_dtype

    # --- AttentionConv o AttentionConvProj folded into one banded matrix (L, L*A) ---
    # attproj[b, l, a] = sum_k cum_padded[b, l+k] * weff[k, a],  weff = wc^T @ wcp
    weff = p["wc"].T @ p["wcp"]                                      # (K, A)
    j = jnp.arange(L)[:, None]                                       # cum index
    l = jnp.arange(L)[None, :]                                       # output position
    k = j - l + PAD
    valid = (k >= 0) & (k < K)
    conv_mat = jnp.where(valid[:, :, None], weff[jnp.clip(k, 0, K - 1)], 0.0)   # (L, L, A)
    conv_mat = conv_mat.reshape(L, L * A).astype(cdt)

    # --- AttentionSelfProj folded into a block-diagonal selection matrix (L*A, L) ---
    wself_vec = p["wself"][0]                                        # (A,)
    eproj_mat = (jnp.eye(L, dtype=f32)[:, None, :] * wself_vec[None, :, None])  # (L, A, L)
    eproj_mat = eproj_mat.reshape(L * A, L).astype(cdt)

    # --- fused LSTM input weights ---
    w1 = jnp.concatenate([p["wys"], p["wss1"], p["wgs"]], axis=0).astype(cdt)   # (dm+d4+d2, 4*d4)
    w2 = jnp.concatenate([p["wis"], p["wss2"]], axis=0).astype(cdt)             # (2*d4,     4*d4)

    # --- fused Frame/Token projection, split by input block (no per-step concat) ---
    wft = jnp.concatenate([p["wf"], p["wt"]], axis=1)                # (d4+d2, V*R + R)
    wft_s = wft[:d4].astype(cdt)
    wft_g = wft[d4:].astype(cdt)
    bft = jnp.concatenate([p["bf"], p["bt"]], axis=1)                # (1, V*R + R)

    def bb(b):  # pre-broadcast bias to (B, .) once, on the host
        return jnp.broadcast_to(b, (B, b.shape[1])).astype(f32)

    return dict(
        conv_mat=conv_mat, eproj_mat=eproj_mat,
        wd=p["wd"].astype(cdt),
        wp1=p["wp1"].astype(cdt), bp1=bb(p["bp1"]),
        wp2=p["wp2"].astype(cdt), bp2=bb(p["bp2"]),
        w1=w1, b1=bb(p["bgs"]),
        w2=w2, b2=bb(p["bss2"]),
        wft_s=wft_s, wft_g=wft_g, bft=bb(bft),
        we=p["we"].astype(cdt), be=p["be"].astype(f32),
    )


# ------------------------------------------------------------------------------- kernels
def _encproj_kernel(enc_ref, we_ref, be_ref, out_ref):
    """Loop-invariant AttentionEncoderProj, computed once: (B*L, E) @ (E, 128) + bias."""
    out_ref[...] = (jnp.dot(enc_ref[...], we_ref[...],
                            preferred_element_type=jnp.float32) + be_ref[...])


def make_step_kernel(*, B, L, d_model, compute_dtype, slab_pad):
    d4 = 4 * d_model
    f32 = jnp.float32
    cdt = compute_dtype

    def gates(rec):
        i = rec[:, 0:d4]
        f = rec[:, d4:2 * d4]
        g = rec[:, 2 * d4:3 * d4]
        o = rec[:, 3 * d4:4 * d4]
        half = 0.5
        return (jnp.tanh(i * half) * half + half,   # sigmoid via tanh, like the reference
                jnp.tanh(f * half) * half + half,
                jnp.tanh(g),
                jnp.tanh(o * half) * half + half)

    def zoneout_cell(rec, c_prev, h_prev, mask):
        ig, fg, cg, og = gates(rec)
        cm = 1.0 - mask
        c_tmp = fg * c_prev + ig * cg
        c_next = mask * c_prev + cm * c_tmp
        h_tmp = og * jnp.tanh(c_next)
        h_next = mask * h_prev + cm * h_tmp
        return h_next, c_next

    def kernel(encflat_ref, enc_ref, prev_ref, mask1_ref, mask2_ref,
               convmat_ref, wd_ref, eprojmat_ref,
               wp1_ref, bp1_ref, wp2_ref, bp2_ref,
               w1_ref, b1_ref, w2_ref, b2_ref,
               wfts_ref, wftg_ref, bft_ref,
               out_ref,
               cum_ref, s1_ref, c1_ref, s2_ref, c2_ref):
        step = pl.program_id(0)

        @pl.when(step == 0)
        def _init():
            cum_ref[...] = jnp.zeros((B, L), f32)
            s1_ref[...] = jnp.zeros((B, d4), f32)
            c1_ref[...] = jnp.zeros((B, d4), f32)
            s2_ref[...] = jnp.zeros((B, d4), f32)
            c2_ref[...] = jnp.zeros((B, d4), f32)

        # ---- location-sensitive attention (conv+proj as a single MXU matmul) ----
        cum = cum_ref[...]                                             # (B, L) f32
        attproj = jnp.dot(cum.astype(cdt), convmat_ref[...],
                          preferred_element_type=f32)                  # (B, L*128)
        decproj = jnp.dot(s2_ref[...].astype(cdt), wd_ref[...],
                          preferred_element_type=f32)                  # (B, 128)
        dec_flat = jnp.concatenate([decproj] * L, axis=1)              # (B, L*128), aligned copies
        e_flat = jnp.tanh(dec_flat + encflat_ref[...] + attproj)       # (B, L*128) f32
        eproj = jnp.dot(e_flat.astype(cdt), eprojmat_ref[...],
                        preferred_element_type=f32)                    # (B, L)  (SelfProj on MXU)

        m = jnp.max(eproj, axis=1, keepdims=True)
        en = jnp.exp(eproj - m)
        alpha = en / jnp.sum(en, axis=1, keepdims=True)                # (B, L)
        cum_ref[...] = cum + alpha                                     # aligned whole-tile update

        enc = enc_ref[...]                                             # (B, L, E) f32
        # context: tiny contraction, kept on VPU/XLU (avoids a batched-matvec lowering path)
        g = jnp.sum(alpha[:, :, None] * enc, axis=1)                   # (B, E)

        # ---- prenet ----
        prev = prev_ref[...]                                           # (B, V)
        pre1 = jnp.maximum(
            jnp.dot(prev, wp1_ref[...], preferred_element_type=f32) + bp1_ref[...], 0.0)
        # nn.Dropout: eval-mode identity.
        pre2 = jnp.maximum(
            jnp.dot(pre1.astype(cdt), wp2_ref[...], preferred_element_type=f32) + bp2_ref[...],
            0.0)

        # ---- zoneout masks (host-generated, streamed per step) ----
        mask1 = mask1_ref[...]                                         # (B, d4) f32
        mask2 = mask2_ref[...]

        # ---- zoneout LSTM layer 1 (fused input matmul) ----
        act1 = jnp.concatenate(
            [pre2.astype(cdt), s1_ref[...].astype(cdt), g.astype(cdt)], axis=1)
        rec1 = jnp.dot(act1, w1_ref[...], preferred_element_type=f32) + b1_ref[...]
        s1n, c1n = zoneout_cell(rec1, c1_ref[...], s1_ref[...], mask1)
        s1_ref[...] = s1n
        c1_ref[...] = c1n

        # ---- zoneout LSTM layer 2 (fused input matmul) ----
        act2 = jnp.concatenate([s1n.astype(cdt), s2_ref[...].astype(cdt)], axis=1)
        rec2 = jnp.dot(act2, w2_ref[...], preferred_element_type=f32) + b2_ref[...]
        s2n, c2n = zoneout_cell(rec2, c2_ref[...], s2_ref[...], mask2)
        s2_ref[...] = s2n
        c2_ref[...] = c2n

        # ---- FrameProj + TokenProj fused; pack frame|token|alpha into one 128-lane slab ----
        ft = (jnp.dot(s2n.astype(cdt), wfts_ref[...], preferred_element_type=f32)
              + jnp.dot(g.astype(cdt), wftg_ref[...], preferred_element_type=f32)
              + bft_ref[...])                                          # (B, V*R + R)
        pieces = [ft, alpha]
        if slab_pad > 0:
            pieces.append(jnp.zeros((B, slab_pad), f32))
        out_ref[...] = jnp.concatenate(pieces, axis=1)                 # single lane-dense store

    return kernel


# ------------------------------------------------------------------------------- wrapper
def tacotron2_decoder_forward(meltarget, e_outputs, params, *, d_model, vocab_size,
                              reduction_rate, zoneout_rate=0.1, rng_key=None,
                              compute_dtype=jnp.bfloat16):
    B, T, V = meltarget.shape
    _, L, E = e_outputs.shape
    assert V == vocab_size
    assert E == 2 * d_model, "reference forward requires d_model_e == 2*d_model"
    R = reduction_rate
    steps = T // R
    d4 = 4 * d_model
    A = ATT_DIM
    FT = V * R + R
    USED = FT + L
    P = max(128, ((USED + 127) // 128) * 128)
    slab_pad = P - USED
    cdt = compute_dtype
    f32 = jnp.float32

    packed = pack_params(params, d_model=d_model, L=L, B=B, compute_dtype=cdt)

    # teacher-forced prev_prediction per step: zeros at step 0, meltarget[:, s*R-1] after.
    prev_in = jnp.zeros((steps, B, V), f32)
    if steps > 1:
        idxs = jnp.arange(1, steps) * R - 1
        prev_in = prev_in.at[1:].set(
            jnp.transpose(meltarget[:, idxs, :].astype(f32), (1, 0, 2)))
    prev_in = prev_in.astype(cdt)

    # zoneout Bernoulli masks, host-generated (matches torch.floor(rand + rate) semantics).
    if rng_key is None:
        rng_key = jax.random.PRNGKey(42)
    k1, k2 = jax.random.split(rng_key)
    mask1_in = jnp.floor(jax.random.uniform(k1, (steps, B, d4), f32) + zoneout_rate)
    mask2_in = jnp.floor(jax.random.uniform(k2, (steps, B, d4), f32) + zoneout_rate)

    vmem_any = pl.BlockSpec(memory_space=pltpu.MemorySpace.VMEM)

    # ---- loop-invariant encoder projection (recomputed per step in the reference, but
    #      identical each time); computed once in a tiny Pallas kernel, flattened on host ----
    encproj_2d = pl.pallas_call(
        _encproj_kernel,
        out_shape=jax.ShapeDtypeStruct((B * L, A), f32),
        in_specs=[vmem_any] * 3,
        out_specs=vmem_any,
    )(e_outputs.astype(cdt).reshape(B * L, E), packed["we"], packed["be"])
    encflat = encproj_2d.reshape(B, L * A)     # lane-dense (B, L*128) layout for the step kernel

    kernel = make_step_kernel(B=B, L=L, d_model=d_model, compute_dtype=cdt, slab_pad=slab_pad)

    inputs = [
        encflat,                                # 0: loop-invariant
        e_outputs.astype(f32),                  # 1: loop-invariant
        prev_in,                                # 2: per-step block
        mask1_in,                               # 3: per-step block
        mask2_in,                               # 4: per-step block
        packed["conv_mat"], packed["wd"], packed["eproj_mat"],
        packed["wp1"], packed["bp1"], packed["wp2"], packed["bp2"],
        packed["w1"], packed["b1"], packed["w2"], packed["b2"],
        packed["wft_s"], packed["wft_g"], packed["bft"],
    ]
    per_step_idx = {2, 3, 4}

    def _const_index_map(ndim):
        zeros = (0,) * ndim
        return lambda *_args: zeros

    in_specs = []
    for idx, x in enumerate(inputs):
        if idx in per_step_idx:
            in_specs.append(pl.BlockSpec((None,) + x.shape[1:], lambda s: (s, 0, 0)))
        else:
            in_specs.append(pl.BlockSpec(x.shape, _const_index_map(x.ndim)))

    out_spec = pl.BlockSpec((None, B, P), lambda s: (s, 0, 0))

    scratch = [
        pltpu.VMEM((B, L), f32),      # cumulate_alpha (lane-aligned, whole-tile updates)
        pltpu.VMEM((B, d4), f32),     # s1
        pltpu.VMEM((B, d4), f32),     # c1
        pltpu.VMEM((B, d4), f32),     # s2
        pltpu.VMEM((B, d4), f32),     # c2
    ]

    # VMEM budget: resident operands (x2 for BlockSpec buffering) + per-step blocks + scratch.
    def _nbytes(x):
        return int(x.size) * x.dtype.itemsize
    resident = sum(_nbytes(x) for i, x in enumerate(inputs) if i not in per_step_idx)
    per_step = 2 * (sum(_nbytes(inputs[i]) // steps for i in per_step_idx) + B * P * 4)
    scratch_b = 4 * (B * L + 4 * B * d4)
    vmem_limit = int(min(max(2 * (resident + per_step + scratch_b) + (8 << 20), 32 << 20),
                         64 << 20))

    slab = pl.pallas_call(
        kernel,
        out_shape=jax.ShapeDtypeStruct((steps, B, P), f32),
        grid=(steps,),
        in_specs=in_specs,
        out_specs=out_spec,
        scratch_shapes=scratch,
        compiler_params=pltpu.CompilerParams(
            dimension_semantics=("arbitrary",),     # sequential recurrence, state in scratch
            vmem_limit_bytes=vmem_limit),
    )(*inputs)

    # host-side unpack of the per-step slab
    frame_raw = slab[:, :, :V * R]               # (steps, B, V*R)
    token_raw = slab[:, :, V * R:FT]             # (steps, B, R)
    att_raw = slab[:, :, FT:USED]                # (steps, B, L)

    # (B, steps, V*R) -> (B, steps*R, V): matches torch frame_prediction.view(B, R, V) order.
    frame_prediction_sent = jnp.transpose(frame_raw, (1, 0, 2)).reshape(B, steps * R, V)
    token_prediction_sent = jnp.transpose(token_raw, (1, 0, 2)).reshape(B, steps * R)
    attention_weight = jnp.zeros((B, 500, L), f32).at[:, :steps, :].set(
        jnp.transpose(att_raw, (1, 0, 2)))
    return frame_prediction_sent, token_prediction_sent, attention_weight


# ---------------------------------------------------------------------------------- main
if __name__ == "__main__":
    d_model = 32
    d_model_e = 2 * d_model          # required by the reference forward
    vocab_size = 16                  # mel-bin count
    reduction_rate = 2
    B = 2
    L = 8                            # encoder length
    T = 8                            # target mel length -> decoder_steps = 4

    key = jax.random.PRNGKey(0)
    k_param, k_mel, k_enc, k_zone = jax.random.split(key, 4)

    params = init_params(k_param, d_model=d_model, d_model_e=d_model_e,
                         vocab_size=vocab_size, reduction_rate=reduction_rate)
    meltarget = jax.random.normal(k_mel, (B, T, vocab_size), jnp.float32)
    e_outputs = jax.random.normal(k_enc, (B, L, d_model_e), jnp.float32)

    frame_pred, token_pred, att_w = tacotron2_decoder_forward(
        meltarget, e_outputs, params,
        d_model=d_model, vocab_size=vocab_size, reduction_rate=reduction_rate,
        zoneout_rate=0.1, rng_key=k_zone)

    jax.block_until_ready((frame_pred, token_pred, att_w))

    steps = T // reduction_rate
    assert frame_pred.shape == (B, T, vocab_size)
    assert token_pred.shape == (B, steps * reduction_rate)
    assert att_w.shape == (B, 500, L)
    assert bool(jnp.all(jnp.isfinite(frame_pred)))
    assert bool(jnp.all(jnp.isfinite(token_pred)))
    # attention rows that were written must be a softmax (sum to 1)
    att_sums = att_w[:, :steps, :].sum(axis=-1)
    assert bool(jnp.all(jnp.abs(att_sums - 1.0) < 1e-3))
    print("KERNEL_OK")
</pallas_src>

<mosaic_0001>
module attributes {stable_mosaic.version = 11 : i64} {
  func.func @_encproj_kernel(%arg0: memref<16x64xbf16, #tpu.memory_space<vmem>>, %arg1: memref<64x128xbf16, #tpu.memory_space<vmem>>, %arg2: memref<1x128xf32, #tpu.memory_space<vmem>>, %arg3: memref<16x128xf32, #tpu.memory_space<vmem>>) attributes {dimension_semantics = [], scalar_prefetch = 0 : i64, scratch_operands = 0 : i64, tpu.core_type = #tpu.core_type<tc>} {
    %c0 = arith.constant 0 : index
    %c0_0 = arith.constant 0 : index
    %0 = vector.load %arg0[%c0, %c0_0] : memref<16x64xbf16, #tpu.memory_space<vmem>>, vector<16x64xbf16>
    %c0_1 = arith.constant 0 : index
    %c0_2 = arith.constant 0 : index
    %1 = vector.load %arg1[%c0_1, %c0_2] : memref<64x128xbf16, #tpu.memory_space<vmem>>, vector<64x128xbf16>
    %cst = arith.constant dense<0.000000e+00> : vector<16x128xf32>
    %2 = tpu.matmul %0, %1, %cst {dimension_numbers = #tpu.dot_dimension_numbers<[1], [0], [0], [1], [0, 0, 1, 1], [], []>} : vector<16x64xbf16>, vector<64x128xbf16>, vector<16x128xf32> -> vector<16x128xf32>
    %c0_3 = arith.constant 0 : index
    %c0_4 = arith.constant 0 : index
    %3 = vector.load %arg2[%c0_3, %c0_4] : memref<1x128xf32, #tpu.memory_space<vmem>>, vector<1x128xf32>
    %4 = vector.broadcast %3 : vector<1x128xf32> to vector<16x128xf32>
    %5 = arith.addf %2, %4 : vector<16x128xf32>
    %c0_5 = arith.constant 0 : index
    %c0_6 = arith.constant 0 : index
    %6 = vector.load %arg3[%c0_5, %c0_6] : memref<16x128xf32, #tpu.memory_space<vmem>>, vector<16x128xf32>
    tpu.vector_store %arg3[%c0_5, %c0_6], %5 {strides = array<i32>} : memref<16x128xf32, #tpu.memory_space<vmem>>, vector<16x128xf32>,
    return
  }
}

</mosaic_0001>

<llo_original>
// kernel: tpu_custom_call.1
$region0: #{tpu_custom_call.1}
  #allocation0 [shape = 'u32[]', space=smem, size = 0x4, offset = 0x4, fixed_abs, tag = 'smem constant byte address 0x4 - core index']
  #allocation1 [shape = 'u32[144,128]{1,0:T(1,128)}', space=vmem, size = 0x12000, scoped, tag = 'internal scratch']
  %s0 = inlined_call_operand.hbm [shape: bf16[16,64], index: 0, kind: input, shape index: {}]
  %s1 = inlined_call_operand.hbm [shape: bf16[64,128], index: 1, kind: input, shape index: {}]
  %s2 = inlined_call_operand.vmem [shape: f32[1,128], index: 2, kind: input, shape index: {}]
  %s3 = inlined_call_operand.hbm [shape: f32[16,128], index: 3, kind: output, shape index: {}]
  %s4 = sld [smem:[#allocation0]]
  $region30: #{tpu_custom_call.1} parent=0
    _
  %s6 = ssub.s32 1, %s4
  %s7 = scalar_select 0, %s6, %s4
  $region1: #{tpu_custom_call.1} parent=0
    #allocation2 [shape = 'u8[4096]{0}', space=vmem, size = 0x1000, scoped, tag = 'input window, operand 0, single buffered']
    #allocation3 [shape = 's32[1]{0}', space=sflag, size = 0x4, scoped, tag = 'scoped memory for tpu_custom_call.1']
    #allocation4 [shape = 's32[1]{0}', space=sflag, size = 0x4, scoped, tag = 'scoped memory for tpu_custom_call.1']
    #allocation5 [shape = 'u8[16384]{0}', space=vmem, size = 0x4000, scoped, tag = 'input window, operand 1, single buffered']
    #allocation6 [shape = 's32[1]{0}', space=sflag, size = 0x4, scoped, tag = 'scoped memory for tpu_custom_call.1']
    #allocation7 [shape = 'u8[8192]{0}', space=vmem, size = 0x2000, scoped, tag = 'output window, operand 0, single buffered']
    %8 = vsyncpa [#allocation3], 0
    %9 = vsyncpa [#allocation6], 0
    %10 = vsyncpa [#allocation4], 0
    // Predicated region
    $region2: #{tpu_custom_call.1} parent=1 // pred_check
      _
    $region3: #{tpu_custom_call.1} parent=1 // pred_check_branch
      %12 = sbr.rel (0) target = $region5
    $region4: #{tpu_custom_call.1} parent=1 // pred_region
      %s14 = ssub.s32 128, 128
      %15 = vsyncadd [#allocation3], %s14
      %s16 = sshll.u32 [#allocation2], 4
      %s17 = int_to_ptr.vmem [resolvable:$true] %s16
      %22 = dma.hbm_to_vmem [thread:$0]  %s0, 128, %s17, [#allocation3], 64, 64, 4
    $region5: #{tpu_custom_call.1} parent=1 // pred_fallthru
      _
    // Predicated region
    $region6: #{tpu_custom_call.1} parent=1 // pred_check
      _
    $region7: #{tpu_custom_call.1} parent=1 // pred_check_branch
      %24 = sbr.rel (0) target = $region9
    $region8: #{tpu_custom_call.1} parent=1 // pred_region
      %s26 = ssub.s32 512, 512
      %27 = vsyncadd [#allocation6], %s26
      %s28 = sshll.u32 [#allocation5], 4
      %s29 = int_to_ptr.vmem [resolvable:$true] %s28
      %34 = dma.hbm_to_vmem [thread:$0]  %s1, 512, %s29, [#allocation6], 64, 64, 4
    $region9: #{tpu_custom_call.1} parent=1 // pred_fallthru
      _
    // Predicated region
    $region10: #{tpu_custom_call.1} parent=1 // pred_check
      _
    $region11: #{tpu_custom_call.1} parent=1 // pred_check_branch
      %36 = sbr.rel (0) target = $region13
    $region12: #{tpu_custom_call.1} parent=1 // pred_region
      _
    $region13: #{tpu_custom_call.1} parent=1 // pred_fallthru
      _
    // Predicated region
    $region14: #{tpu_custom_call.1} parent=1 // pred_check
      _
    $region15: #{tpu_custom_call.1} parent=1 // pred_check_branch
      %38 = sbr.rel (0) target = $region17
    $region16: #{tpu_custom_call.1} parent=1 // pred_region
      %39 = dma.done [#allocation3], 128
    $region17: #{tpu_custom_call.1} parent=1 // pred_fallthru
      _
    // Predicated region
    $region18: #{tpu_custom_call.1} parent=1 // pred_check
      _
    $region19: #{tpu_custom_call.1} parent=1 // pred_check_branch
      %41 = sbr.rel (0) target = $region21
    $region20: #{tpu_custom_call.1} parent=1 // pred_region
      %42 = dma.done [#allocation6], 512
    $region21: #{tpu_custom_call.1} parent=1 // pred_fallthru
      _
    %v44 = vld [vmem:[#allocation2] sm:$0xf]
    %v45 = vld [vmem:[#allocation2 + $0x4] sm:$0xf]
    %v46 = vld [vmem:[#allocation5] sm:$0xf]
    %v47 = vld [vmem:[#allocation5 + $0x4] sm:$0xf]
    %v48 = vld [vmem:[#allocation5 + $0x8] sm:$0xf]
    %v49 = vld [vmem:[#allocation5 + $0xc] sm:$0xf]
    %v50 = vld [vmem:[#allocation5 + $0x10] sm:$0xf]
    %v51 = vld [vmem:[#allocation5 + $0x14] sm:$0xf]
    %v52 = vld [vmem:[#allocation5 + $0x18] sm:$0xf]
    %v53 = vld [vmem:[#allocation5 + $0x1c] sm:$0xf]
    %v54 = vld [vmem:[%s2] sm:$0x1]
    %v56 = vlaneseq
    %v57 = vshrl.u32 %v56, 7
    %v58 = vsub.s32 0, %v57
    %v59 = vrot.slane %v54, %v58
    %v63 = vunpack.c.l.b16 %v44
    %v64 = vunpack.c.l.b16 %v45
    %v65 = vpack.c.b16 %v64, %v63
    %v74 = vunpack.c.l.b16 %v46
    %v75 = vunpack.c.l.b16 %v47
    %v76 = vunpack.c.l.b16 %v48
    %v77 = vunpack.c.l.b16 %v49
    %v78 = vunpack.c.l.b16 %v50
    %v79 = vunpack.c.l.b16 %v51
    %v80 = vunpack.c.l.b16 %v52
    %v81 = vunpack.c.l.b16 %v53
    %v82 = vpack.c.b16 %v75, %v74
    %v83 = vpack.c.b16 %v77, %v76
    %v84 = vpack.c.b16 %v79, %v78
    %v85 = vpack.c.b16 %v81, %v80
    %vm90 = vcmask 523264
    %v92 = vsel %vm90, %v65, 0
    %94 = vmatprep.subr.bf16.mxu0 0
    %95 = vmatpush1.bf16.msra.mxu0 %v82
    %96 = vmatprep.subr.bf16.mxu0 0
    %97 = vmatpush1.bf16.msra.mxu0 %v83
    %98 = vmatprep.subr.bf16.mxu0 0
    %99 = vmatpush1.bf16.msra.mxu0 %v84
    %100 = vmatprep.subr.bf16.mxu0 0
    %101 = vmatpush1.bf16.msra.mxu0 %v85
    %102 = vmatprep.subr.bf16.mxu0 0
    %103 = vmatpush1.bf16.msra.mxu0 0
    %104 = vmatprep.subr.bf16.mxu0 0
    %105 = vmatpush1.bf16.msra.mxu0 0
    %106 = vmatprep.subr.bf16.mxu0 0
    %107 = vmatpush1.bf16.msra.mxu0 0
    %108 = vmatprep.subr.bf16.mxu0 0
    %109 = vmatpush1.bf16.msra.mxu0 0
    %110 = vmatprep.subr.bf16.mxu0 0
    %111 = vmatpush1.bf16.msra.mxu0 0
    %112 = vmatprep.subr.bf16.mxu0 0
    %113 = vmatpush1.bf16.msra.mxu0 0
    %114 = vmatprep.subr.bf16.mxu0 0
    %115 = vmatpush1.bf16.msra.mxu0 0
    %116 = vmatprep.subr.bf16.mxu0 0
    %117 = vmatpush1.bf16.msra.mxu0 0
    %118 = vmatprep.subr.bf16.mxu0 0
    %119 = vmatpush1.bf16.msra.mxu0 0
    %120 = vmatprep.subr.bf16.mxu0 0
    %121 = vmatpush1.bf16.msra.mxu0 0
    %122 = vmatprep.subr.bf16.mxu0 0
    %123 = vmatpush1.bf16.msra.mxu0 0
    %124 = vmatprep.subr.bf16.mxu0 0
    %125 = vmatpush1.bf16.msra.mxu0 0
    %126 = vmatprep.mubr.bf16.mxu0 0
    %127 = vmatmul.mubr.bf16.gmra.mrb[0].mxu0 %v92
    %v128 = vpop.f32.mrb[0].mxu0
    %v129 = vadd.f32 %v59, %v128
    %v130 = vpop.f32.mrb[0].mxu0
    %v131 = vpop.f32.mrb[0].mxu0
    %v132 = vadd.f32 %v59, %v131
    %v133 = vpop.f32.mrb[0].mxu0
    %134 = vdwg.mxu0
    %135 = vst [vmem:[#allocation7] sm:$0xff] %v129
    %136 = vst [vmem:[#allocation7 + $0x8] sm:$0xff] %v132
    // Predicated region
    $region22: #{tpu_custom_call.1} parent=1 // pred_check
      _
    $region23: #{tpu_custom_call.1} parent=1 // pred_check_branch
      %138 = sbr.rel (0) target = $region25
    $region24: #{tpu_custom_call.1} parent=1 // pred_region
      %s140 = ssub.s32 256, 256
      %141 = vsyncadd [#allocation4], %s140
      %s142 = sshll.u32 [#allocation7], 4
      %s143 = int_to_ptr.vmem [resolvable:$true] %s142
      %148 = dma.vmem_to_hbm [thread:$0]  %s143, 256, %s3, [#allocation4], 128, 128, 8
    $region25: #{tpu_custom_call.1} parent=1 // pred_fallthru
      _
    // Predicated region
    $region26: #{tpu_custom_call.1} parent=1 // pred_check
      _
    $region27: #{tpu_custom_call.1} parent=1 // pred_check_branch
      %150 = sbr.rel (0) target = $region29
    $region28: #{tpu_custom_call.1} parent=1 // pred_region
      %151 = dma.done [#allocation4], 256
    $region29: #{tpu_custom_call.1} parent=1 // pred_fallthru
      _
    %152 = vsyncpa [#allocation3], 1
    %153 = vsyncpa [#allocation6], 1
    %154 = vsyncpa [#allocation4], 1

</llo_original>
